<compile_context>
chip_gen: v7x
topology: tpu7x:2x2x1
jax: 0.10.0
libtpu: 0.0.40
codegen_flags: <defaults>
</compile_context>

<pallas_src>
import functools
import math

import jax
import jax.numpy as jnp
from jax.experimental import pallas as pl
from jax.experimental.pallas import tpu as pltpu

BN_EPS = 1e-5
LANE = 128


def _pick_tile(total, target):
    """Largest tile <= target that divides `total` and is 8-aligned (else `total`)."""
    if total <= target:
        return total
    for t in range(target, 0, -1):
        if total % t == 0 and t % 8 == 0:
            return t
    return total


def _round_up(x, m):
    return (x + m - 1) // m * m


def _vmem_limit(est_bytes):
    """Generous scoped-VMEM limit from a per-call estimate (floor 32 MiB, cap 100 MiB)."""
    return int(min(max(2 * est_bytes + (8 << 20), 32 << 20), 100 << 20))


# ----------------------------------------------------------------------------
# Kernel A: pointwise (1x1) conv with BN folded into the weight, + ReLU.
#   x:(M, Cin) f32 @ w:(Cin, Cout) bf16  -> ReLU -> (M, Cout) bf16
#   Tiled over M (pixels); weight stays resident (constant index_map, Buffered(1)).
# ----------------------------------------------------------------------------
def _pw_conv_relu_kernel(x_ref, w_ref, o_ref):
    y = jnp.dot(x_ref[...].astype(jnp.bfloat16), w_ref[...],
                preferred_element_type=jnp.float32)
    o_ref[...] = jnp.maximum(y, 0.0).astype(o_ref.dtype)   # bf16 store: half the HBM writeback


def pw_conv_relu(x2d, w_bf16, *, tile_m=1024):
    M, Cin = x2d.shape
    Cout = w_bf16.shape[1]
    tm = _pick_tile(M, tile_m)
    est = 2 * (tm * Cin * x2d.dtype.itemsize) + Cin * Cout * 2 + 2 * (tm * Cout * 2)
    cost = pl.CostEstimate(
        flops=2 * M * Cin * Cout,
        transcendentals=0,
        bytes_accessed=M * Cin * x2d.dtype.itemsize + Cin * Cout * 2 + M * Cout * 2,
    )
    return pl.pallas_call(
        _pw_conv_relu_kernel,
        out_shape=jax.ShapeDtypeStruct((M, Cout), jnp.bfloat16),
        grid=(M // tm,),
        in_specs=[
            pl.BlockSpec((tm, Cin), lambda i: (i, 0)),
            pl.BlockSpec((Cin, Cout), lambda i: (0, 0),
                         pipeline_mode=pl.Buffered(1)),     # resident weight, single buffer
        ],
        out_specs=pl.BlockSpec((tm, Cout), lambda i: (i, 0)),
        compiler_params=pltpu.CompilerParams(
            dimension_semantics=("parallel",),
            vmem_limit_bytes=_vmem_limit(est)),
        cost_estimate=cost,
    )(x2d, w_bf16)


# ----------------------------------------------------------------------------
# Kernel B: fused pointwise conv2 (+folded BN) + ReLU + global-average-pool.
#   Grid (hw_splits, N, HW_steps_per_split).  Per (s, n, h) step: conv2 on a
#   (T, C) bf16 tile, accumulate the per-(split, sample) GAP sum in f32 VMEM
#   scratch.  On the last hw step: write the scaled partial GAP row.
#   Per-split partials are summed outside (splits*N*C2 floats -> negligible).
# ----------------------------------------------------------------------------
def _conv2_gap_kernel(x_ref, w2_ref, gap_ref, acc_ref, *, inv_hw):
    h = pl.program_id(2)

    @pl.when(h == 0)
    def _():
        acc_ref[...] = jnp.zeros_like(acc_ref)

    x = x_ref[0].astype(jnp.bfloat16)                      # (T, C) bf16
    y = jnp.dot(x, w2_ref[...], preferred_element_type=jnp.float32)
    y = jnp.maximum(y, 0.0)
    acc_ref[...] += jnp.sum(y, axis=0, keepdims=True)      # (1, C2) f32 partial sum

    @pl.when(h == pl.num_programs(2) - 1)
    def _():
        gap_ref[0, 0] = acc_ref[...] * inv_hw              # scaled partial GAP


def conv2_gap(x3d, w2_bf16, *, tile_hw=512, hw_splits=1):
    N, HW, C = x3d.shape
    C2 = w2_bf16.shape[1]
    t = _pick_tile(HW, tile_hw)
    steps = HW // t
    splits = hw_splits if (hw_splits > 0 and steps % hw_splits == 0) else 1
    steps_per_split = steps // splits

    est = 2 * (t * C * 2) + C * C2 * 2 + 2 * (C2 * 4) + C2 * 4
    cost = pl.CostEstimate(
        flops=2 * N * HW * C * C2,
        transcendentals=0,
        bytes_accessed=N * HW * C * 2 + C * C2 * 2 + splits * N * C2 * 4,
    )
    kernel = functools.partial(_conv2_gap_kernel, inv_hw=1.0 / HW)
    out = pl.pallas_call(
        kernel,
        out_shape=jax.ShapeDtypeStruct((splits, N, 1, C2), jnp.float32),
        grid=(splits, N, steps_per_split),
        in_specs=[
            pl.BlockSpec((1, t, C),
                         lambda s, n, h: (n, s * steps_per_split + h, 0)),
            pl.BlockSpec((C, C2), lambda s, n, h: (0, 0),
                         pipeline_mode=pl.Buffered(1)),     # 8 MiB bf16 at real widths: single buffer
        ],
        out_specs=pl.BlockSpec((1, 1, 1, C2), lambda s, n, h: (s, n, 0, 0)),
        scratch_shapes=[pltpu.VMEM((1, C2), jnp.float32)],
        compiler_params=pltpu.CompilerParams(
            dimension_semantics=("parallel", "parallel", "arbitrary"),
            vmem_limit_bytes=_vmem_limit(est)),
        cost_estimate=cost,
    )(x3d, w2_bf16)
    # Combine per-split partial means (tiny).
    return out.reshape(splits, N, C2).sum(axis=0)


# ----------------------------------------------------------------------------
# Kernel C: ClassBlock head on all N GAP rows at once.
#   BN1d -> ReLU -> Linear(in_planes,512) -> BN1d -> classifier, with both
#   constant BN scales folded into w1 at init.  wc is pre-padded to a lane
#   multiple for a dense store; the pad is sliced off by the caller.
# ----------------------------------------------------------------------------
def _head_kernel(gap_ref, w1_ref, wc_ref, y_ref):
    g = jnp.maximum(gap_ref[...], 0.0).astype(jnp.bfloat16)         # BN(fold) -> ReLU
    b = jnp.dot(g, w1_ref[...], preferred_element_type=jnp.float32)  # Linear (+ BN fold)
    y_ref[...] = jnp.dot(b.astype(jnp.bfloat16), wc_ref[...],
                         preferred_element_type=jnp.float32)


def class_head(gap_f32, w1_bf16, wc_pad_bf16):
    N = gap_f32.shape[0]
    Kp = wc_pad_bf16.shape[1]
    # Whole arrays fit trivially in VMEM (w1 is 2 MiB bf16 at real widths); no grid.
    return pl.pallas_call(
        _head_kernel,
        out_shape=jax.ShapeDtypeStruct((N, Kp), jnp.float32),
    )(gap_f32, w1_bf16, wc_pad_bf16)


# ----------------------------------------------------------------------------
# Parameter init (deterministic, mirrors weights_init_kaiming / _classifier),
# with the constant eval-mode BN scales folded into the weights and the
# classifier padded to a lane multiple.
# ----------------------------------------------------------------------------
def init_params(key, cin, in_planes, num_bottleneck, num_classes):
    k1, k2, k3, k4 = jax.random.split(key, 4)
    inv = 1.0 / math.sqrt(1.0 + BN_EPS)   # BN eval, fresh stats: x * 1/sqrt(var+eps)

    # Conv stubs: kaiming_normal fan_in (weights_init_kaiming for Conv); BN2d folded in.
    w_conv1 = jax.random.normal(k1, (cin, in_planes), jnp.float32) * math.sqrt(2.0 / cin)
    w_conv2 = jax.random.normal(k2, (in_planes, in_planes), jnp.float32) * math.sqrt(2.0 / in_planes)
    # ClassBlock add_block Linear: kaiming_normal fan_out; both BN1d scales folded in.
    w1 = jax.random.normal(k3, (in_planes, num_bottleneck), jnp.float32) * math.sqrt(2.0 / num_bottleneck)
    # classifier Linear: normal std=0.001; zero-padded to a multiple of 128 lanes.
    w2 = jax.random.normal(k4, (num_bottleneck, num_classes), jnp.float32) * 0.001
    kp = _round_up(num_classes, LANE)
    w2_pad = jnp.zeros((num_bottleneck, kp), jnp.float32).at[:, :num_classes].set(w2)

    return dict(
        w_conv1=(w_conv1 * inv).astype(jnp.bfloat16),
        w_conv2=(w_conv2 * inv).astype(jnp.bfloat16),
        w1=(w1 * inv * inv).astype(jnp.bfloat16),
        w2=w2_pad.astype(jnp.bfloat16),
    )


# ----------------------------------------------------------------------------
# Full forward (layout plumbing in plain JAX, hot paths in Pallas)
# ----------------------------------------------------------------------------
def teacher_model_forward(x_nchw, params, *, num_classes,
                          tile_m=1024, tile_hw=512, hw_splits=1,
                          feat_nchw=False):
    N, Cin, H, W = x_nchw.shape
    in_planes = params["w_conv1"].shape[1]

    # NCHW -> channels-last pixels (the backbone stub is pointwise).
    # TODO(synk): for a real NHWC backbone this transpose can be dropped too.
    x_flat = jnp.transpose(x_nchw, (0, 2, 3, 1)).reshape(N * H * W, Cin)

    # Kernel A: backbone stub stage 1 -> feat (bf16; memory-bound stage).
    feat_flat = pw_conv_relu(x_flat, params["w_conv1"], tile_m=tile_m)

    # Kernel B: conv2 + ReLU + GAP; the big activation never round-trips HBM.
    x3d = feat_flat.reshape(N, H * W, in_planes)
    gap = conv2_gap(x3d, params["w_conv2"], tile_hw=tile_hw, hw_splits=hw_splits)

    # Kernel C: ClassBlock head on all N rows; slice off the lane padding.
    y = class_head(gap, params["w1"], params["w2"])[:, :num_classes]

    # feat is returned NHWC (bf16) by default: transposing back to NCHW costs a
    # full extra HBM read+write of the feature map.  Opt in only if a consumer
    # genuinely needs the PyTorch NCHW layout.
    feat = feat_flat.reshape(N, H, W, in_planes)
    if feat_nchw:
        feat = jnp.transpose(feat, (0, 3, 1, 2))
    return feat, y


if __name__ == "__main__":
    # Small shapes consistent with the forward: NCHW image input.
    N, Cin, H, W = 2, 4, 16, 16
    in_planes = 32          # backbone output channels (self.in_planes)
    num_bottleneck = 512    # ClassBlock num_bottleneck in Single_Teacher
    num_classes = 8

    key = jax.random.PRNGKey(0)
    kx, kp = jax.random.split(key)
    x = jax.random.normal(kx, (N, Cin, H, W), jnp.float32)
    params = init_params(kp, Cin, in_planes, num_bottleneck, num_classes)

    # Small tiles + hw_splits=2 so the demo exercises multi-step accumulation,
    # the split-GAP combine and the padded classifier slice; the defaults
    # (1024 / 512) are sized for real backbone activations.
    fwd = jax.jit(functools.partial(
        teacher_model_forward, num_classes=num_classes,
        tile_m=128, tile_hw=64, hw_splits=2))
    feat, y = fwd(x, params)
    jax.block_until_ready(feat)
    jax.block_until_ready(y)

    assert feat.shape == (N, H, W, in_planes), feat.shape
    assert feat.dtype == jnp.bfloat16, feat.dtype
    assert y.shape == (N, num_classes), y.shape
    print("KERNEL_OK")
</pallas_src>

<mosaic_0001>
module attributes {stable_mosaic.version = 11 : i64} {
  func.func @_conv2_gap_kernel(%arg0: i32, %arg1: i32, %arg2: i32, %arg3: memref<1x64x32xbf16, #tpu.memory_space<vmem>>, %arg4: memref<32x32xbf16, #tpu.memory_space<vmem>>, %arg5: memref<1x1x1x32xf32, #tpu.memory_space<vmem>>, %arg6: memref<1x32xf32, #tpu.memory_space<vmem>>) attributes {dimension_semantics = [#tpu.dimension_semantics<parallel>, #tpu.dimension_semantics<parallel>, #tpu.dimension_semantics<arbitrary>], iteration_bounds = array<i64: 2, 2, 2>, scalar_prefetch = 0 : i64, scratch_operands = 1 : i64, tpu.core_type = #tpu.core_type<tc>, window_params = [{transform_indices = @transform_0, window_bounds = array<i64: 1, 64, 32>}, {pipeline_mode = #tpu.pipeline_mode<synchronous>, transform_indices = @transform_1, window_bounds = array<i64: 32, 32>}, {transform_indices = @transform_2, window_bounds = array<i64: 1, 1, 1, 32>}]} {
    %c0_i32 = arith.constant 0 : i32
    %0 = arith.cmpi eq, %arg2, %c0_i32 : i32
    %1 = arith.extui %0 : i1 to i32
    %c0_i32_0 = arith.constant 0 : i32
    %2 = arith.cmpi ne, %1, %c0_i32_0 : i32
    scf.if %2 {
      %cst_12 = arith.constant 0.000000e+00 : f32
      %17 = vector.broadcast %cst_12 : f32 to vector<1x32xf32>
      %c0_13 = arith.constant 0 : index
      %c0_14 = arith.constant 0 : index
      %18 = vector.load %arg6[%c0_13, %c0_14] : memref<1x32xf32, #tpu.memory_space<vmem>>, vector<1x32xf32>
      tpu.vector_store %arg6[%c0_13, %c0_14], %17 {strides = array<i32>} : memref<1x32xf32, #tpu.memory_space<vmem>>, vector<1x32xf32>,
    } else {
    }
    %c0 = arith.constant 0 : index
    %c0_1 = arith.constant 0 : index
    %c0_2 = arith.constant 0 : index
    %3 = vector.load %arg3[%c0, %c0_1, %c0_2] : memref<1x64x32xbf16, #tpu.memory_space<vmem>>, vector<1x64x32xbf16>
    %4 = vector.shape_cast %3 : vector<1x64x32xbf16> to vector<64x32xbf16>
    %c0_3 = arith.constant 0 : index
    %c0_4 = arith.constant 0 : index
    %5 = vector.load %arg4[%c0_3, %c0_4] : memref<32x32xbf16, #tpu.memory_space<vmem>>, vector<32x32xbf16>
    %cst = arith.constant dense<0.000000e+00> : vector<64x32xf32>
    %6 = tpu.matmul %4, %5, %cst {dimension_numbers = #tpu.dot_dimension_numbers<[1], [0], [0], [1], [0, 0, 1, 1], [], []>} : vector<64x32xbf16>, vector<32x32xbf16>, vector<64x32xf32> -> vector<64x32xf32>
    %cst_5 = arith.constant 0.000000e+00 : f32
    %7 = vector.broadcast %cst_5 : f32 to vector<64x32xf32>
    %8 = arith.maximumf %6, %7 : vector<64x32xf32>
    %c0_6 = arith.constant 0 : index
    %c0_7 = arith.constant 0 : index
    %9 = vector.load %arg6[%c0_6, %c0_7] : memref<1x32xf32, #tpu.memory_space<vmem>>, vector<1x32xf32>
    %cst_8 = arith.constant dense<0.000000e+00> : vector<32xf32>
    %10 = vector.multi_reduction <add>, %8, %cst_8 [0] : vector<64x32xf32> to vector<32xf32>
    %11 = vector.shape_cast %10 : vector<32xf32> to vector<1x32xf32>
    %12 = arith.addf %9, %11 : vector<1x32xf32>
    %c0_9 = arith.constant 0 : index
    %c0_10 = arith.constant 0 : index
    %13 = vector.load %arg6[%c0_9, %c0_10] : memref<1x32xf32, #tpu.memory_space<vmem>>, vector<1x32xf32>
    tpu.vector_store %arg6[%c0_9, %c0_10], %12 {strides = array<i32>} : memref<1x32xf32, #tpu.memory_space<vmem>>, vector<1x32xf32>,
    %c1_i32 = arith.constant 1 : i32
    %14 = arith.cmpi eq, %arg2, %c1_i32 : i32
    %15 = arith.extui %14 : i1 to i32
    %c0_i32_11 = arith.constant 0 : i32
    %16 = arith.cmpi ne, %15, %c0_i32_11 : i32
    scf.if %16 {
      %c0_12 = arith.constant 0 : index
      %c0_13 = arith.constant 0 : index
      %17 = vector.load %arg6[%c0_12, %c0_13] : memref<1x32xf32, #tpu.memory_space<vmem>>, vector<1x32xf32>
      %cst_14 = arith.constant 3.906250e-03 : f32
      %18 = vector.broadcast %cst_14 : f32 to vector<1x32xf32>
      %19 = arith.mulf %17, %18 : vector<1x32xf32>
      %c0_15 = arith.constant 0 : index
      %c0_16 = arith.constant 0 : index
      %c0_17 = arith.constant 0 : index
      %c0_18 = arith.constant 0 : index
      %20 = vector.load %arg5[%c0_15, %c0_16, %c0_17, %c0_18] : memref<1x1x1x32xf32, #tpu.memory_space<vmem>>, vector<1x1x1x32xf32>
      %21 = vector.shape_cast %20 : vector<1x1x1x32xf32> to vector<1x32xf32>
      %22 = vector.shape_cast %19 : vector<1x32xf32> to vector<1x1x1x32xf32>
      tpu.vector_store %arg5[%c0_15, %c0_16, %c0_17, %c0_18], %22 {strides = array<i32>} : memref<1x1x1x32xf32, #tpu.memory_space<vmem>>, vector<1x1x1x32xf32>,
    } else {
    }
    return
  }
  func.func @transform_0(%arg0: i32, %arg1: i32, %arg2: i32) -> (i32, i32, i32) {
    %c2_i32 = arith.constant 2 : i32
    %0 = arith.muli %arg0, %c2_i32 : i32
    %1 = arith.addi %0, %arg2 : i32
    %c0_i32 = arith.constant 0 : i32
    %c0_i32_0 = arith.constant 0 : i32
    return %arg1, %1, %c0_i32 : i32, i32, i32
  }
  func.func @transform_1(%arg0: i32, %arg1: i32, %arg2: i32) -> (i32, i32) {
    %c0_i32 = arith.constant 0 : i32
    %c0_i32_0 = arith.constant 0 : i32
    %c0_i32_1 = arith.constant 0 : i32
    return %c0_i32, %c0_i32_0 : i32, i32
  }
  func.func @transform_2(%arg0: i32, %arg1: i32, %arg2: i32) -> (i32, i32, i32, i32) {
    %c0_i32 = arith.constant 0 : i32
    %c0_i32_0 = arith.constant 0 : i32
    %c0_i32_1 = arith.constant 0 : i32
    return %arg0, %arg1, %c0_i32, %c0_i32_0 : i32, i32, i32, i32
  }
}

module attributes {stable_mosaic.version = 11 : i64} {
  func.func @_pw_conv_relu_kernel(%arg0: i32, %arg1: memref<128x4xf32, #tpu.memory_space<vmem>>, %arg2: memref<4x32xbf16, #tpu.memory_space<vmem>>, %arg3: memref<128x32xbf16, #tpu.memory_space<vmem>>) attributes {dimension_semantics = [#tpu.dimension_semantics<parallel>], iteration_bounds = array<i64: 4>, scalar_prefetch = 0 : i64, scratch_operands = 0 : i64, tpu.core_type = #tpu.core_type<tc>, window_params = [{transform_indices = @transform_0, window_bounds = array<i64: 128, 4>}, {pipeline_mode = #tpu.pipeline_mode<synchronous>, transform_indices = @transform_1, window_bounds = array<i64: 4, 32>}, {transform_indices = @transform_2, window_bounds = array<i64: 128, 32>}]} {
    %c0 = arith.constant 0 : index
    %c0_0 = arith.constant 0 : index
    %0 = vector.load %arg1[%c0, %c0_0] : memref<128x4xf32, #tpu.memory_space<vmem>>, vector<128x4xf32>
    %1 = arith.truncf %0 : vector<128x4xf32> to vector<128x4xbf16>
    %c0_1 = arith.constant 0 : index
    %c0_2 = arith.constant 0 : index
    %2 = vector.load %arg2[%c0_1, %c0_2] : memref<4x32xbf16, #tpu.memory_space<vmem>>, vector<4x32xbf16>
    %cst = arith.constant dense<0.000000e+00> : vector<128x32xf32>
    %3 = tpu.matmul %1, %2, %cst {dimension_numbers = #tpu.dot_dimension_numbers<[1], [0], [0], [1], [0, 0, 1, 1], [], []>} : vector<128x4xbf16>, vector<4x32xbf16>, vector<128x32xf32> -> vector<128x32xf32>
    %cst_3 = arith.constant 0.000000e+00 : f32
    %4 = vector.broadcast %cst_3 : f32 to vector<128x32xf32>
    %5 = arith.maximumf %3, %4 : vector<128x32xf32>
    %6 = arith.truncf %5 : vector<128x32xf32> to vector<128x32xbf16>
    %c0_4 = arith.constant 0 : index
    %c0_5 = arith.constant 0 : index
    %7 = vector.load %arg3[%c0_4, %c0_5] : memref<128x32xbf16, #tpu.memory_space<vmem>>, vector<128x32xbf16>
    tpu.vector_store %arg3[%c0_4, %c0_5], %6 {strides = array<i32>} : memref<128x32xbf16, #tpu.memory_space<vmem>>, vector<128x32xbf16>,
    return
  }
  func.func @transform_0(%arg0: i32) -> (i32, i32) {
    %c0_i32 = arith.constant 0 : i32
    %c0_i32_0 = arith.constant 0 : i32
    return %arg0, %c0_i32 : i32, i32
  }
  func.func @transform_1(%arg0: i32) -> (i32, i32) {
    %c0_i32 = arith.constant 0 : i32
    %c0_i32_0 = arith.constant 0 : i32
    %c0_i32_1 = arith.constant 0 : i32
    return %c0_i32, %c0_i32_0 : i32, i32
  }
  func.func @transform_2(%arg0: i32) -> (i32, i32) {
    %c0_i32 = arith.constant 0 : i32
    %c0_i32_0 = arith.constant 0 : i32
    return %arg0, %c0_i32 : i32, i32
  }
}

module attributes {stable_mosaic.version = 11 : i64} {
  func.func @_head_kernel(%arg0: memref<2x32xf32, #tpu.memory_space<vmem>>, %arg1: memref<32x512xbf16, #tpu.memory_space<vmem>>, %arg2: memref<512x128xbf16, #tpu.memory_space<vmem>>, %arg3: memref<2x128xf32, #tpu.memory_space<vmem>>) attributes {dimension_semantics = [], scalar_prefetch = 0 : i64, scratch_operands = 0 : i64, tpu.core_type = #tpu.core_type<tc>} {
    %c0 = arith.constant 0 : index
    %c0_0 = arith.constant 0 : index
    %0 = vector.load %arg0[%c0, %c0_0] : memref<2x32xf32, #tpu.memory_space<vmem>>, vector<2x32xf32>
    %cst = arith.constant 0.000000e+00 : f32
    %1 = vector.broadcast %cst : f32 to vector<2x32xf32>
    %2 = arith.maximumf %0, %1 : vector<2x32xf32>
    %3 = arith.truncf %2 : vector<2x32xf32> to vector<2x32xbf16>
    %c0_1 = arith.constant 0 : index
    %c0_2 = arith.constant 0 : index
    %4 = vector.load %arg1[%c0_1, %c0_2] : memref<32x512xbf16, #tpu.memory_space<vmem>>, vector<32x512xbf16>
    %cst_3 = arith.constant dense<0.000000e+00> : vector<2x512xf32>
    %5 = tpu.matmul %3, %4, %cst_3 {dimension_numbers = #tpu.dot_dimension_numbers<[1], [0], [0], [1], [0, 0, 1, 1], [], []>} : vector<2x32xbf16>, vector<32x512xbf16>, vector<2x512xf32> -> vector<2x512xf32>
    %6 = arith.truncf %5 : vector<2x512xf32> to vector<2x512xbf16>
    %c0_4 = arith.constant 0 : index
    %c0_5 = arith.constant 0 : index
    %7 = vector.load %arg2[%c0_4, %c0_5] : memref<512x128xbf16, #tpu.memory_space<vmem>>, vector<512x128xbf16>
    %cst_6 = arith.constant dense<0.000000e+00> : vector<2x128xf32>
    %8 = tpu.matmul %6, %7, %cst_6 {dimension_numbers = #tpu.dot_dimension_numbers<[1], [0], [0], [1], [0, 0, 1, 1], [], []>} : vector<2x512xbf16>, vector<512x128xbf16>, vector<2x128xf32> -> vector<2x128xf32>
    %c0_7 = arith.constant 0 : index
    %c0_8 = arith.constant 0 : index
    %9 = vector.load %arg3[%c0_7, %c0_8] : memref<2x128xf32, #tpu.memory_space<vmem>>, vector<2x128xf32>
    tpu.vector_store %arg3[%c0_7, %c0_8], %8 {strides = array<i32>} : memref<2x128xf32, #tpu.memory_space<vmem>>, vector<2x128xf32>,
    return
  }
}

</mosaic_0001>

<llo_original>
// kernel: teacher_model_forward.4
$region0: #{teacher_model_forward.4}
  #allocation0 [shape = 'u32[]', space=smem, size = 0x4, offset = 0x4, fixed_abs, tag = 'smem constant byte address 0x4 - core index']
  #allocation1 [shape = 'u32[144,128]{1,0:T(1,128)}', space=vmem, size = 0x12000, scoped, tag = 'internal scratch']
  #allocation2 [shape = 'f32[1,32]{1,0:T(1,128)}', space=vmem, size = 0x200, scoped, tag = 'scratch operand']
  %s0 = inlined_call_operand.vmem [shape: bf16[2,256,32], index: 0, kind: input, shape index: {}]
  %s1 = inlined_call_operand.vmem [shape: bf16[32,32], index: 1, kind: input, shape index: {}]
  %s2 = inlined_call_operand.vmem [shape: f32[2,2,1,32], index: 2, kind: output, shape index: {}]
  %s3 = sld [smem:[#allocation0]]
  $region49: #{teacher_model_forward.4} parent=0
    _
  %s5 = ssub.s32 1, %s3
  %s6 = scalar_select 0, %s5, %s3
  loop: start=0, step=1, limit=10
  $region2: #{teacher_model_forward.4} parent=0 // loop_pre_header
    _
  $region3: #{teacher_model_forward.4} parent=0 // loop_header
    %s8 = sphi 0, %s12
    %p9 = scmp.ge.s32.totalorder %s8, 10
    %s15 = sphi 0, %s34
    %s16 = sphi 0, %s30
    %s17 = sphi 0, %s26
    %s18 = sphi 0, %s15
    %s19 = sphi 0, %s16
    %s20 = sphi 0, %s17
    %s21 = sphi 0, %s18
    %s22 = sphi 0, %s19
    %s23 = sphi 0, %s20
    %s43 = sphi 0, %s45
    %s46 = sphi 0, %s43
    %s47 = sphi 0, %s46
    %s63 = sphi 0, %s47
    %s67 = sphi 0, %s67
    %s69 = sphi 0, %s67
    %s70 = sphi 0, %s69
    %s84 = sphi 0, %s70
    %s92 = sphi 0, %s94
    %s95 = sphi 0, %s92
    %s96 = sphi 0, %s95
    %s112 = sphi 0, %s96
  $region4: #{teacher_model_forward.4} parent=0 // loop_header_branch
    %11 = sbr.rel (%p9) target = $region8
  $region5: #{teacher_model_forward.4} parent=0 // loop_body
    %s13 = ssub.s32 %s8, 1
    %s14 = ssub.s32 %s8, 2
    %s24 = sadd.s32 1, %s17
    %p25 = scmp.ge.s32.totalorder %s24, 2
    %s26 = scalar_select %p25, 0, %s24
    %s27 = sadd.s32 1, %s16
    %s28 = scalar_select %p25, %s27, %s16
    %p29 = scmp.ge.s32.totalorder %s28, 2
    %s30 = scalar_select %p29, 0, %s28
    %s31 = sadd.s32 1, %s15
    %s32 = scalar_select %p29, %s31, %s15
    %p33 = scmp.ge.s32.totalorder %s32, 2
    %s34 = scalar_select %p33, 0, %s32
    %s35 = smul.u32 %s15, 2
    %s36 = sadd.s32 %s35, %s17
    %s37 = smul.u32 %s34, 2
    %s38 = sadd.s32 %s37, %s26
    %s39 = ssub.s32 %s16, %s30
    %s40 = ssub.s32 %s36, %s38
    %s41 = sor.u32 %s39, %s40
    %p42 = scmp.eq.s32.totalorder %s41, 0
    %s44 = sadd.s32 %s43, 1
    %s45 = scalar_select %p42, %s43, %s44
    %p48 = pneg %p42
    %p49 = scmp.eq.s32.totalorder %s8, 7
    %p50 = por %p48, %p49
    %p51 = scmp.ne.s32.totalorder %s43, %s46
    %p52 = scmp.eq.s32.totalorder %s8, 0
    %p53 = por %p51, %p52
    %p54 = scmp.ne.s32.totalorder %s43, %s46
    %p55 = scmp.eq.s32.totalorder %s13, 7
    %p56 = por %p54, %p55
    %p57 = scmp.ne.s32.totalorder %s46, %s47
    %p58 = scmp.eq.s32.totalorder %s13, 0
    %p59 = por %p57, %p58
    %p60 = scmp.ne.s32.totalorder %s46, %s47
    %p61 = scmp.eq.s32.totalorder %s14, 7
    %p62 = por %p60, %p61
    %p64 = scmp.ne.s32.totalorder %s47, %s63
    %p65 = scmp.eq.s32.totalorder %s14, 0
    %p66 = por %p64, %p65
    %s68 = sadd.s32 %s67, 1
    %p71 = scmp.eq.s32.totalorder %s8, 7
    %p72 = scmp.ne.s32.totalorder %s67, %s69
    %p73 = scmp.eq.s32.totalorder %s8, 0
    %p74 = por %p72, %p73
    %p75 = scmp.ne.s32.totalorder %s67, %s69
    %p76 = scmp.eq.s32.totalorder %s13, 7
    %p77 = por %p75, %p76
    %p78 = scmp.ne.s32.totalorder %s69, %s70
    %p79 = scmp.eq.s32.totalorder %s13, 0
    %p80 = por %p78, %p79
    %p81 = scmp.ne.s32.totalorder %s69, %s70
    %p82 = scmp.eq.s32.totalorder %s14, 7
    %p83 = por %p81, %p82
    %p85 = scmp.ne.s32.totalorder %s70, %s84
    %p86 = scmp.eq.s32.totalorder %s14, 0
    %p87 = por %p85, %p86
    %s88 = ssub.s32 %s15, %s34
    %s89 = ssub.s32 %s16, %s30
    %s90 = sor.u32 %s88, %s89
    %p91 = scmp.eq.s32.totalorder %s90, 0
    %s93 = sadd.s32 %s92, 1
    %s94 = scalar_select %p91, %s92, %s93
    %p97 = pneg %p91
    %p98 = scmp.eq.s32.totalorder %s8, 7
    %p99 = por %p97, %p98
    %p100 = scmp.ne.s32.totalorder %s92, %s95
    %p101 = scmp.eq.s32.totalorder %s8, 0
    %p102 = por %p100, %p101
    %p103 = scmp.ne.s32.totalorder %s92, %s95
    %p104 = scmp.eq.s32.totalorder %s13, 7
    %p105 = por %p103, %p104
    %p106 = scmp.ne.s32.totalorder %s95, %s96
    %p107 = scmp.eq.s32.totalorder %s13, 0
    %p108 = por %p106, %p107
    %p109 = scmp.ne.s32.totalorder %s95, %s96
    %p110 = scmp.eq.s32.totalorder %s14, 7
    %p111 = por %p109, %p110
    %p113 = scmp.ne.s32.totalorder %s96, %s112
    %p114 = scmp.eq.s32.totalorder %s14, 0
    %p115 = por %p113, %p114
    %p116 = scmp.le.s32.totalorder 1, %s8
    %p117 = scmp.lt.s32.totalorder %s8, 9
    %p118 = pnand %p116, %p117
    %p119 = pneg %p118
    // Predicated region
    $region9: #{teacher_model_forward.4} parent=5 // pred_check
      _
    $region10: #{teacher_model_forward.4} parent=5 // pred_check_branch
      %121 = sbr.rel (%p118) target = $region12
    $region11: #{teacher_model_forward.4} parent=5 // pred_region
      %s122 = ssub.s32 %s8, 1
      // Predicated region
      $region13: #{teacher_model_forward.4} parent=11 // pred_check
        %p123 = pneg %p80
      $region14: #{teacher_model_forward.4} parent=11 // pred_check_branch
        %125 = sbr.rel (%p123) target = $region16
      $region15: #{teacher_model_forward.4} parent=11 // pred_region
        _
      $region16: #{teacher_model_forward.4} parent=11 // pred_fallthru
        _
    $region12: #{teacher_model_forward.4} parent=5 // pred_fallthru
      _
    %p126 = scmp.lt.s32.totalorder %s8, 8
    // Predicated region
    $region17: #{teacher_model_forward.4} parent=5 // pred_check
      %p127 = pneg %p126
    $region18: #{teacher_model_forward.4} parent=5 // pred_check_branch
      %129 = sbr.rel (%p127) target = $region20
    $region19: #{teacher_model_forward.4} parent=5 // pred_region
      // Predicated region
      $region21: #{teacher_model_forward.4} parent=19 // pred_check
        %p130 = pneg %p53
      $region22: #{teacher_model_forward.4} parent=19 // pred_check_branch
        %132 = sbr.rel (%p130) target = $region24
      $region23: #{teacher_model_forward.4} parent=19 // pred_region
        %s133 = smul.u32 %s15, 2
        %s134 = sadd.s32 %s133, %s17
        %s135 = smul.u32 8, %s134
        %p136 = scmp.lt.s32.totalorder %s16, 1
        %s137 = scalar_select %p136, %s16, 1
        %p138 = scmp.lt.s32.totalorder %s135, 31
        %s139 = scalar_select %p138, %s135, 31
        %s140 = smul.addr %s137, 32
        %s141 = sadd.s32 %s139, %s140
        %s142 = smul.addr %s141, 4
        %s143 = scalar_lea.vmem %s0, %s142
        %s144 = smul.u32 %s15, 2
        %s145 = sadd.s32 %s144, %s17
        %s146 = smul.u32 8, %s145
      $region24: #{teacher_model_forward.4} parent=19 // pred_fallthru
        _
    $region20: #{teacher_model_forward.4} parent=5 // pred_fallthru
      _
    %p147 = scmp.le.s32.totalorder 1, %s8
    %p148 = scmp.lt.s32.totalorder %s8, 9
    %p149 = pnand %p147, %p148
    %p150 = pneg %p149
    // Predicated region
    $region25: #{teacher_model_forward.4} parent=5 // pred_check
      _
    $region26: #{teacher_model_forward.4} parent=5 // pred_check_branch
      %152 = sbr.rel (%p149) target = $region28
    $region27: #{teacher_model_forward.4} parent=5 // pred_region
      %s153 = ssub.s32 %s8, 1
      %s154 = smul.u32 %s18, 2
      %s155 = sadd.s32 %s154, %s20
      %s156 = smul.u32 8, %s155
      %p157 = scmp.lt.s32.totalorder %s19, 1
      %s158 = scalar_select %p157, %s19, 1
      %p159 = scmp.lt.s32.totalorder %s156, 31
      %s160 = scalar_select %p159, %s156, 31
      %s161 = smul.addr %s158, 32
      %s162 = sadd.s32 %s160, %s161
      %s163 = smul.addr %s162, 4
      %s164 = scalar_lea.vmem %s0, %s163
      %p165 = pneg %p59
      %p166 = pneg %p56
      %p167 = pneg %p80
      %p168 = pneg %p77
      %p169 = pneg %p108
      %p170 = pneg %p105
      %p171 = scmp.lt.s32.totalorder %s18, 1
      %s172 = scalar_select %p171, %s18, 1
      %p173 = scmp.lt.s32.totalorder %s19, 1
      %s174 = scalar_select %p173, %s19, 1
      %s175 = smul.addr %s172, 2
      %s176 = sadd.s32 %s174, %s175
      %s177 = scalar_lea.vmem %s2, %s176
      %s178 = smul.u32 %s18, 2
      %s179 = sadd.s32 %s178, %s20
      %s180 = smul.u32 8, %s179
      %p181 = scmp.lt.s32.totalorder %s19, 1
      %s182 = scalar_select %p181, %s19, 1
      %p183 = scmp.lt.s32.totalorder %s180, 31
      %s184 = scalar_select %p183, %s180, 31
      %s185 = smul.addr %s182, 32
      %s186 = sadd.s32 %s184, %s185
      %s187 = smul.addr %s186, 4
      %s188 = scalar_lea.vmem %s0, %s187
      %s189 = smul.u32 %s18, 2
      %s190 = sadd.s32 %s189, %s20
      %s191 = smul.u32 8, %s190
      %p192 = scmp.lt.s32.totalorder %s18, 1
      %s193 = scalar_select %p192, %s18, 1
      %p194 = scmp.lt.s32.totalorder %s19, 1
      %s195 = scalar_select %p194, %s19, 1
      %s196 = smul.addr %s193, 2
      %s197 = sadd.s32 %s195, %s196
      %s198 = scalar_lea.vmem %s2, %s197
      %p200 = scmp.eq.s32.totalorder %s20, 0
      // Predicated region
      $region29: #{teacher_model_forward.4} parent=27 // pred_check
        %p201 = pneg %p200
      $region30: #{teacher_model_forward.4} parent=27 // pred_check_branch
        %203 = sbr.rel (%p201) target = $region32
      $region31: #{teacher_model_forward.4} parent=27 // pred_region
        %vm204 = vcmask 253952
        %205 = vst.msk [vmem:[#allocation2] sm:$0x1] %vm204, 0.0
      $region32: #{teacher_model_forward.4} parent=27 // pred_fallthru
        _
      %v206 = vld [vmem:[%s188] sm:$0xf]
      %v207 = vld [vmem:[%s188 + $0x4] sm:$0xf]
      %v208 = vld [vmem:[%s188 + $0x8] sm:$0xf]
      %v209 = vld [vmem:[%s188 + $0xc] sm:$0xf]
      %v210 = vld [vmem:[%s188 + $0x10] sm:$0xf]
      %v211 = vld [vmem:[%s188 + $0x14] sm:$0xf]
      %v212 = vld [vmem:[%s188 + $0x18] sm:$0xf]
      %v213 = vld [vmem:[%s188 + $0x1c] sm:$0xf]
      %v214 = vld [vmem:[%s1] sm:$0xf]
      %v215 = vld [vmem:[%s1 + $0x4] sm:$0xf]
      %v216 = vld [vmem:[%s1 + $0x8] sm:$0xf]
      %v217 = vld [vmem:[%s1 + $0xc] sm:$0xf]
      %v226 = vunpack.c.l.b16 %v206
      %v227 = vunpack.c.l.b16 %v207
      %v228 = vunpack.c.l.b16 %v208
      %v229 = vunpack.c.l.b16 %v209
      %v230 = vunpack.c.l.b16 %v210
      %v231 = vunpack.c.l.b16 %v211
      %v232 = vunpack.c.l.b16 %v212
      %v233 = vunpack.c.l.b16 %v213
      %v234 = vpack.c.b16 %v227, %v226
      %v235 = vpack.c.b16 %v229, %v228
      %v236 = vpack.c.b16 %v231, %v230
      %v237 = vpack.c.b16 %v233, %v232
      %v242 = vunpack.c.l.b16 %v214
      %v243 = vunpack.c.l.b16 %v215
      %v244 = vunpack.c.l.b16 %v216
      %v245 = vunpack.c.l.b16 %v217
      %v246 = vpack.c.b16 %v243, %v242
      %v247 = vpack.c.b16 %v245, %v244
      %vm250 = vcmask 261120
      %v252 = vsel %vm250, %v234, 0
      %v255 = vsel %vm250, %v235, 0
      %v258 = vsel %vm250, %v236, 0
      %v261 = vsel %vm250, %v237, 0
      %263 = vmatprep.subr.bf16.mxu0 0
      %264 = vmatpush1.bf16.msra.mxu0 %v246
      %265 = vmatprep.subr.bf16.mxu0 0
      %266 = vmatpush1.bf16.msra.mxu0 %v247
      %267 = vmatprep.subr.bf16.mxu0 0
      %268 = vmatpush1.bf16.msra.mxu0 0
      %269 = vmatprep.subr.bf16.mxu0 0
      %270 = vmatpush1.bf16.msra.mxu0 0
      %271 = vmatprep.subr.bf16.mxu0 0
      %272 = vmatpush1.bf16.msra.mxu0 0
      %273 = vmatprep.subr.bf16.mxu0 0
      %274 = vmatpush1.bf16.msra.mxu0 0
      %275 = vmatprep.subr.bf16.mxu0 0
      %276 = vmatpush1.bf16.msra.mxu0 0
      %277 = vmatprep.subr.bf16.mxu0 0
      %278 = vmatpush1.bf16.msra.mxu0 0
      %279 = vmatprep.subr.bf16.mxu0 0
      %280 = vmatpush1.bf16.msra.mxu0 0
      %281 = vmatprep.subr.bf16.mxu0 0
      %282 = vmatpush1.bf16.msra.mxu0 0
      %283 = vmatprep.subr.bf16.mxu0 0
      %284 = vmatpush1.bf16.msra.mxu0 0
      %285 = vmatprep.subr.bf16.mxu0 0
      %286 = vmatpush1.bf16.msra.mxu0 0
      %287 = vmatprep.subr.bf16.mxu0 0
      %288 = vmatpush1.bf16.msra.mxu0 0
      %289 = vmatprep.subr.bf16.mxu0 0
      %290 = vmatpush1.bf16.msra.mxu0 0
      %291 = vmatprep.subr.bf16.mxu0 0
      %292 = vmatpush1.bf16.msra.mxu0 0
      %293 = vmatprep.subr.bf16.mxu0 0
      %294 = vmatpush1.bf16.msra.mxu0 0
      %295 = vmatprep.mubr.bf16.mxu0 0
      %296 = vmatmul.mubr.bf16.gmra.mrb[0].mxu0 %v252
      %v297 = vpop.f32.mrb[0].mxu0
      %v298 = vadd.f32 0.0, %v297
      %v299 = vpop.f32.mrb[0].mxu0
      %v300 = vpop.f32.mrb[0].mxu0
      %v301 = vadd.f32 0.0, %v300
      %v302 = vpop.f32.mrb[0].mxu0
      %303 = vmatprep.mubr.bf16.mxu0 0
      %304 = vmatmul.mubr.bf16.gmra.mrb[0].mxu0 %v255
      %v305 = vpop.f32.mrb[0].mxu0
      %v306 = vadd.f32 0.0, %v305
      %v307 = vpop.f32.mrb[0].mxu0
      %v308 = vpop.f32.mrb[0].mxu0
      %v309 = vadd.f32 0.0, %v308
      %v310 = vpop.f32.mrb[0].mxu0
      %311 = vmatprep.mubr.bf16.mxu0 0
      %312 = vmatmul.mubr.bf16.gmra.mrb[0].mxu0 %v258
      %v313 = vpop.f32.mrb[0].mxu0
      %v314 = vadd.f32 0.0, %v313
      %v315 = vpop.f32.mrb[0].mxu0
      %v316 = vpop.f32.mrb[0].mxu0
      %v317 = vadd.f32 0.0, %v316
      %v318 = vpop.f32.mrb[0].mxu0
      %319 = vmatprep.mubr.bf16.mxu0 0
      %320 = vmatmul.mubr.bf16.gmra.mrb[0].mxu0 %v261
      %v321 = vpop.f32.mrb[0].mxu0
      %v322 = vadd.f32 0.0, %v321
      %v323 = vpop.f32.mrb[0].mxu0
      %v324 = vpop.f32.mrb[0].mxu0
      %v325 = vadd.f32 0.0, %v324
      %v326 = vpop.f32.mrb[0].mxu0
      %327 = vdwg.mxu0
      %v328 = vmax.f32 %v298, 0.0
      %v329 = vmax.f32 %v301, 0.0
      %v330 = vmax.f32 %v306, 0.0
      %v331 = vmax.f32 %v309, 0.0
      %v332 = vmax.f32 %v314, 0.0
      %v333 = vmax.f32 %v317, 0.0
      %v334 = vmax.f32 %v322, 0.0
      %v335 = vmax.f32 %v325, 0.0
      %v336 = vld [vmem:[#allocation2] sm:$0x1]
      %v337 = vsel %vm250, %v328, 0.0
      %v338 = vsel %vm250, %v329, 0.0
      %v339 = vadd.f32 %v337, %v338
      %v340 = vsel %vm250, %v330, 0.0
      %v341 = vadd.f32 %v339, %v340
      %v342 = vsel %vm250, %v331, 0.0
      %v343 = vadd.f32 %v341, %v342
      %v344 = vsel %vm250, %v332, 0.0
      %v345 = vadd.f32 %v343, %v344
      %v346 = vsel %vm250, %v333, 0.0
      %v347 = vadd.f32 %v345, %v346
      %v348 = vsel %vm250, %v334, 0.0
      %v349 = vadd.f32 %v347, %v348
      %v350 = vsel %vm250, %v335, 0.0
      %v351 = vadd.f32 %v349, %v350
      %v352 = vrot.slane %v351, 4
      %v353 = vadd.f32 %v351, %v352
      %v354 = vrot.slane %v353, 2
      %v355 = vadd.f32 %v353, %v354
      %v356 = vrot.slane %v355, 1
      %v357 = vadd.f32 %v355, %v356
      %v358 = vadd.f32 %v336, %v357
      %vm359 = vcmask 253952
      %360 = vst.msk [vmem:[#allocation2] sm:$0x1] %vm359, %v358
      %p361 = scmp.eq.s32.totalorder %s20, 1
      // Predicated region
      $region33: #{teacher_model_forward.4} parent=27 // pred_check
        %p362 = pneg %p361
      $region34: #{teacher_model_forward.4} parent=27 // pred_check_branch
        %364 = sbr.rel (%p362) target = $region36
      $region35: #{teacher_model_forward.4} parent=27 // pred_region
        %v365 = vld [vmem:[#allocation2] sm:$0x1]
        %v366 = vmul.f32 %v365, 0.00390625
        %367 = vst.msk [vmem:[%s198] sm:$0x1] %vm359, %v366
      $region36: #{teacher_model_forward.4} parent=27 // pred_fallthru
        _
      %p368 = scmp.lt.s32.totalorder %s18, 1
      %s369 = scalar_select %p368, %s18, 1
      %p370 = scmp.lt.s32.totalorder %s19, 1
      %s371 = scalar_select %p370, %s19, 1
      %s372 = smul.addr %s369, 2
      %s373 = sadd.s32 %s371, %s372
      %s374 = scalar_lea.vmem %s2, %s373
      // Predicated region
      $region37: #{teacher_model_forward.4} parent=27 // pred_check
        %p375 = pneg %p105
      $region38: #{teacher_model_forward.4} parent=27 // pred_check_branch
        %377 = sbr.rel (%p375) target = $region40
      $region39: #{teacher_model_forward.4} parent=27 // pred_region
        _
      $region40: #{teacher_model_forward.4} parent=27 // pred_fallthru
        _
    $region28: #{teacher_model_forward.4} parent=5 // pred_fallthru
      _
    %p378 = scmp.le.s32.totalorder 2, %s8
    // Predicated region
    $region41: #{teacher_model_forward.4} parent=5 // pred_check
      %p379 = pneg %p378
    $region42: #{teacher_model_forward.4} parent=5 // pred_check_branch
      %381 = sbr.rel (%p379) target = $region44
    $region43: #{teacher_model_forward.4} parent=5 // pred_region
      %s382 = ssub.s32 %s8, 2
      // Predicated region
      $region45: #{teacher_model_forward.4} parent=43 // pred_check
        %p383 = pneg %p111
      $region46: #{teacher_model_forward.4} parent=43 // pred_check_branch
        %385 = sbr.rel (%p383) target = $region48
      $region47: #{teacher_model_forward.4} parent=43 // pred_region
        %p386 = scmp.lt.s32.totalorder %s21, 1
        %s387 = scalar_select %p386, %s21, 1
        %p388 = scmp.lt.s32.totalorder %s22, 1
        %s389 = scalar_select %p388, %s22, 1
        %s390 = smul.addr %s387, 2
        %s391 = sadd.s32 %s389, %s390
        %s392 = scalar_lea.vmem %s2, %s391
      $region48: #{teacher_model_forward.4} parent=43 // pred_fallthru
        _
    $region44: #{teacher_model_forward.4} parent=5 // pred_fallthru
      _
  $region6: #{teacher_model_forward.4} parent=0 // loop_footer
    %s12 = sadd.s32 1, %s8
  $region7: #{teacher_model_forward.4} parent=0 // loop_footer_branch
    %7 = sbr.rel target = $region3
  $region8: #{teacher_model_forward.4} parent=0 // loop_exit
    _

// kernel: teacher_model_forward.3
$region0: #{teacher_model_forward.3}
  #allocation0 [shape = 'u32[]', space=smem, size = 0x4, offset = 0x4, fixed_abs, tag = 'smem constant byte address 0x4 - core index']
  #allocation1 [shape = 'u32[144,128]{1,0:T(1,128)}', space=vmem, size = 0x12000, scoped, tag = 'internal scratch']
  %s0 = inlined_call_operand.vmem [shape: f32[512,4], index: 0, kind: input, shape index: {}]
  %s1 = inlined_call_operand.vmem [shape: bf16[4,32], index: 1, kind: input, shape index: {}]
  %s2 = inlined_call_operand.vmem [shape: bf16[512,32], index: 2, kind: output, shape index: {}]
  %s3 = sld [smem:[#allocation0]]
  $region41: #{teacher_model_forward.3} parent=0
    _
  %s5 = ssub.s32 1, %s3
  %s6 = scalar_select 0, %s5, %s3
  loop: start=0, step=1, limit=6
  $region2: #{teacher_model_forward.3} parent=0 // loop_pre_header
    _
  $region3: #{teacher_model_forward.3} parent=0 // loop_header
    %s8 = sphi 0, %s12
    %p9 = scmp.ge.s32.totalorder %s8, 6
    %s18 = sphi 0, %s20
    %s21 = sphi 0, %s18
    %s22 = sphi 0, %s21
    %s38 = sphi 0, %s22
    %s42 = sphi 0, %s42
    %s44 = sphi 0, %s42
    %s45 = sphi 0, %s44
    %s59 = sphi 0, %s45
    %s65 = sphi 0, %s67
    %s68 = sphi 0, %s65
    %s69 = sphi 0, %s68
    %s85 = sphi 0, %s69
  $region4: #{teacher_model_forward.3} parent=0 // loop_header_branch
    %11 = sbr.rel (%p9) target = $region8
  $region5: #{teacher_model_forward.3} parent=0 // loop_body
    %s13 = ssub.s32 %s8, 1
    %s14 = ssub.s32 %s8, 2
    %s15 = sadd.s32 %s8, 1
    %s16 = ssub.s32 %s8, %s15
    %p17 = scmp.eq.s32.totalorder %s16, 0
    %s19 = sadd.s32 %s18, 1
    %s20 = scalar_select %p17, %s18, %s19
    %p23 = pneg %p17
    %p24 = scmp.eq.s32.totalorder %s8, 3
    %p25 = por %p23, %p24
    %p26 = scmp.ne.s32.totalorder %s18, %s21
    %p27 = scmp.eq.s32.totalorder %s8, 0
    %p28 = por %p26, %p27
    %p29 = scmp.ne.s32.totalorder %s18, %s21
    %p30 = scmp.eq.s32.totalorder %s13, 3
    %p31 = por %p29, %p30
    %p32 = scmp.ne.s32.totalorder %s21, %s22
    %p33 = scmp.eq.s32.totalorder %s13, 0
    %p34 = por %p32, %p33
    %p35 = scmp.ne.s32.totalorder %s21, %s22
    %p36 = scmp.eq.s32.totalorder %s14, 3
    %p37 = por %p35, %p36
    %p39 = scmp.ne.s32.totalorder %s22, %s38
    %p40 = scmp.eq.s32.totalorder %s14, 0
    %p41 = por %p39, %p40
    %s43 = sadd.s32 %s42, 1
    %p46 = scmp.eq.s32.totalorder %s8, 3
    %p47 = scmp.ne.s32.totalorder %s42, %s44
    %p48 = scmp.eq.s32.totalorder %s8, 0
    %p49 = por %p47, %p48
    %p50 = scmp.ne.s32.totalorder %s42, %s44
    %p51 = scmp.eq.s32.totalorder %s13, 3
    %p52 = por %p50, %p51
    %p53 = scmp.ne.s32.totalorder %s44, %s45
    %p54 = scmp.eq.s32.totalorder %s13, 0
    %p55 = por %p53, %p54
    %p56 = scmp.ne.s32.totalorder %s44, %s45
    %p57 = scmp.eq.s32.totalorder %s14, 3
    %p58 = por %p56, %p57
    %p60 = scmp.ne.s32.totalorder %s45, %s59
    %p61 = scmp.eq.s32.totalorder %s14, 0
    %p62 = por %p60, %p61
    %s63 = ssub.s32 %s8, %s15
    %p64 = scmp.eq.s32.totalorder %s63, 0
    %s66 = sadd.s32 %s65, 1
    %s67 = scalar_select %p64, %s65, %s66
    %p70 = pneg %p64
    %p71 = scmp.eq.s32.totalorder %s8, 3
    %p72 = por %p70, %p71
    %p73 = scmp.ne.s32.totalorder %s65, %s68
    %p74 = scmp.eq.s32.totalorder %s8, 0
    %p75 = por %p73, %p74
    %p76 = scmp.ne.s32.totalorder %s65, %s68
    %p77 = scmp.eq.s32.totalorder %s13, 3
    %p78 = por %p76, %p77
    %p79 = scmp.ne.s32.totalorder %s68, %s69
    %p80 = scmp.eq.s32.totalorder %s13, 0
    %p81 = por %p79, %p80
    %p82 = scmp.ne.s32.totalorder %s68, %s69
    %p83 = scmp.eq.s32.totalorder %s14, 3
    %p84 = por %p82, %p83
    %p86 = scmp.ne.s32.totalorder %s69, %s85
    %p87 = scmp.eq.s32.totalorder %s14, 0
    %p88 = por %p86, %p87
    %p89 = scmp.le.s32.totalorder 1, %s8
    %p90 = scmp.lt.s32.totalorder %s8, 5
    %p91 = pnand %p89, %p90
    %p92 = pneg %p91
    // Predicated region
    $region9: #{teacher_model_forward.3} parent=5 // pred_check
      _
    $region10: #{teacher_model_forward.3} parent=5 // pred_check_branch
      %94 = sbr.rel (%p91) target = $region12
    $region11: #{teacher_model_forward.3} parent=5 // pred_region
      %s95 = ssub.s32 %s8, 1
      // Predicated region
      $region13: #{teacher_model_forward.3} parent=11 // pred_check
        %p96 = pneg %p55
      $region14: #{teacher_model_forward.3} parent=11 // pred_check_branch
        %98 = sbr.rel (%p96) target = $region16
      $region15: #{teacher_model_forward.3} parent=11 // pred_region
        _
      $region16: #{teacher_model_forward.3} parent=11 // pred_fallthru
        _
    $region12: #{teacher_model_forward.3} parent=5 // pred_fallthru
      _
    %p99 = scmp.lt.s32.totalorder %s8, 4
    // Predicated region
    $region17: #{teacher_model_forward.3} parent=5 // pred_check
      %p100 = pneg %p99
    $region18: #{teacher_model_forward.3} parent=5 // pred_check_branch
      %102 = sbr.rel (%p100) target = $region20
    $region19: #{teacher_model_forward.3} parent=5 // pred_region
      // Predicated region
      $region21: #{teacher_model_forward.3} parent=19 // pred_check
        %p103 = pneg %p28
      $region22: #{teacher_model_forward.3} parent=19 // pred_check_branch
        %105 = sbr.rel (%p103) target = $region24
      $region23: #{teacher_model_forward.3} parent=19 // pred_region
        %s106 = smul.u32 16, %s8
        %p107 = scmp.lt.s32.totalorder %s106, 63
        %s108 = scalar_select %p107, %s106, 63
        %s109 = smul.addr %s108, 8
        %s110 = scalar_lea.vmem %s0, %s109
        %s111 = smul.u32 16, %s8
      $region24: #{teacher_model_forward.3} parent=19 // pred_fallthru
        _
    $region20: #{teacher_model_forward.3} parent=5 // pred_fallthru
      _
    %p112 = scmp.le.s32.totalorder 1, %s8
    %p113 = scmp.lt.s32.totalorder %s8, 5
    %p114 = pnand %p112, %p113
    %p115 = pneg %p114
    // Predicated region
    $region25: #{teacher_model_forward.3} parent=5 // pred_check
      _
    $region26: #{teacher_model_forward.3} parent=5 // pred_check_branch
      %117 = sbr.rel (%p114) target = $region28
    $region27: #{teacher_model_forward.3} parent=5 // pred_region
      %s118 = ssub.s32 %s8, 1
      %s119 = smul.u32 16, %s13
      %p120 = scmp.lt.s32.totalorder %s119, 63
      %s121 = scalar_select %p120, %s119, 63
      %s122 = smul.addr %s121, 8
      %s123 = scalar_lea.vmem %s0, %s122
      %p124 = pneg %p34
      %p125 = pneg %p31
      %p126 = pneg %p55
      %p127 = pneg %p52
      %p128 = pneg %p81
      %p129 = pneg %p78
      %s130 = smul.u32 16, %s13
      %p131 = scmp.lt.s32.totalorder %s130, 63
      %s132 = scalar_select %p131, %s130, 63
      %s133 = smul.addr %s132, 4
      %s134 = scalar_lea.vmem %s2, %s133
      %s135 = smul.u32 16, %s13
      %p136 = scmp.lt.s32.totalorder %s135, 63
      %s137 = scalar_select %p136, %s135, 63
      %s138 = smul.addr %s137, 8
      %s139 = scalar_lea.vmem %s0, %s138
      %s140 = smul.u32 16, %s13
      %s141 = smul.u32 16, %s13
      %p142 = scmp.lt.s32.totalorder %s141, 63
      %s143 = scalar_select %p142, %s141, 63
      %s144 = smul.addr %s143, 4
      %s145 = scalar_lea.vmem %s2, %s144
      %s146 = smul.u32 16, %s13
      %v148 = vld [vmem:[%s139] sm:$0xff]
      %v149 = vld [vmem:[%s139 + $0x8] sm:$0xff]
      %v150 = vld [vmem:[%s139 + $0x10] sm:$0xff]
      %v151 = vld [vmem:[%s139 + $0x18] sm:$0xff]
      %v152 = vld [vmem:[%s139 + $0x20] sm:$0xff]
      %v153 = vld [vmem:[%s139 + $0x28] sm:$0xff]
      %v154 = vld [vmem:[%s139 + $0x30] sm:$0xff]
      %v155 = vld [vmem:[%s139 + $0x38] sm:$0xff]
      %v156 = vld [vmem:[%s139 + $0x40] sm:$0xff]
      %v157 = vld [vmem:[%s139 + $0x48] sm:$0xff]
      %v158 = vld [vmem:[%s139 + $0x50] sm:$0xff]
      %v159 = vld [vmem:[%s139 + $0x58] sm:$0xff]
      %v160 = vld [vmem:[%s139 + $0x60] sm:$0xff]
      %v161 = vld [vmem:[%s139 + $0x68] sm:$0xff]
      %v162 = vld [vmem:[%s139 + $0x70] sm:$0xff]
      %v163 = vld [vmem:[%s139 + $0x78] sm:$0xff]
      %v164 = vpack.c.bf16 %v149, %v148
      %v165 = vpack.c.bf16 %v151, %v150
      %v166 = vpack.c.bf16 %v153, %v152
      %v167 = vpack.c.bf16 %v155, %v154
      %v168 = vpack.c.bf16 %v157, %v156
      %v169 = vpack.c.bf16 %v159, %v158
      %v170 = vpack.c.bf16 %v161, %v160
      %v171 = vpack.c.bf16 %v163, %v162
      %v172 = vld [vmem:[%s1] sm:$0x3]
      %vm173 = vcmask 31744
      %v175 = vsel %vm173, %v164, 0
      %v178 = vsel %vm173, %v165, 0
      %v181 = vsel %vm173, %v166, 0
      %v184 = vsel %vm173, %v167, 0
      %v187 = vsel %vm173, %v168, 0
      %v190 = vsel %vm173, %v169, 0
      %v193 = vsel %vm173, %v170, 0
      %v196 = vsel %vm173, %v171, 0
      %vm198 = vcmask 1041408
      %v200 = vsel %vm198, %v172, 0
      %202 = vmatprep.subr.bf16.mxu0 0
      %203 = vmatpush1.bf16.msra.mxu0 %v200
      %204 = vmatprep.subr.bf16.mxu0 0
      %205 = vmatpush1.bf16.msra.mxu0 0
      %206 = vmatprep.subr.bf16.mxu0 0
      %207 = vmatpush1.bf16.msra.mxu0 0
      %208 = vmatprep.subr.bf16.mxu0 0
      %209 = vmatpush1.bf16.msra.mxu0 0
      %210 = vmatprep.subr.bf16.mxu0 0
      %211 = vmatpush1.bf16.msra.mxu0 0
      %212 = vmatprep.subr.bf16.mxu0 0
      %213 = vmatpush1.bf16.msra.mxu0 0
      %214 = vmatprep.subr.bf16.mxu0 0
      %215 = vmatpush1.bf16.msra.mxu0 0
      %216 = vmatprep.subr.bf16.mxu0 0
      %217 = vmatpush1.bf16.msra.mxu0 0
      %218 = vmatprep.subr.bf16.mxu0 0
      %219 = vmatpush1.bf16.msra.mxu0 0
      %220 = vmatprep.subr.bf16.mxu0 0
      %221 = vmatpush1.bf16.msra.mxu0 0
      %222 = vmatprep.subr.bf16.mxu0 0
      %223 = vmatpush1.bf16.msra.mxu0 0
      %224 = vmatprep.subr.bf16.mxu0 0
      %225 = vmatpush1.bf16.msra.mxu0 0
      %226 = vmatprep.subr.bf16.mxu0 0
      %227 = vmatpush1.bf16.msra.mxu0 0
      %228 = vmatprep.subr.bf16.mxu0 0
      %229 = vmatpush1.bf16.msra.mxu0 0
      %230 = vmatprep.subr.bf16.mxu0 0
      %231 = vmatpush1.bf16.msra.mxu0 0
      %232 = vmatprep.subr.bf16.mxu0 0
      %233 = vmatpush1.bf16.msra.mxu0 0
      %234 = vmatprep.mubr.bf16.mxu0 0
      %235 = vmatmul.mubr.bf16.gmra.mrb[0].mxu0 %v175
      %v236 = vpop.f32.mrb[0].mxu0
      %v237 = vadd.f32 0.0, %v236
      %v238 = vpop.f32.mrb[0].mxu0
      %v239 = vpop.f32.mrb[0].mxu0
      %v240 = vadd.f32 0.0, %v239
      %v241 = vpop.f32.mrb[0].mxu0
      %242 = vmatprep.mubr.bf16.mxu0 0
      %243 = vmatmul.mubr.bf16.gmra.mrb[0].mxu0 %v178
      %v244 = vpop.f32.mrb[0].mxu0
      %v245 = vadd.f32 0.0, %v244
      %v246 = vpop.f32.mrb[0].mxu0
      %v247 = vpop.f32.mrb[0].mxu0
      %v248 = vadd.f32 0.0, %v247
      %v249 = vpop.f32.mrb[0].mxu0
      %250 = vmatprep.mubr.bf16.mxu0 0
      %251 = vmatmul.mubr.bf16.gmra.mrb[0].mxu0 %v181
      %v252 = vpop.f32.mrb[0].mxu0
      %v253 = vadd.f32 0.0, %v252
      %v254 = vpop.f32.mrb[0].mxu0
      %v255 = vpop.f32.mrb[0].mxu0
      %v256 = vadd.f32 0.0, %v255
      %v257 = vpop.f32.mrb[0].mxu0
      %258 = vmatprep.mubr.bf16.mxu0 0
      %259 = vmatmul.mubr.bf16.gmra.mrb[0].mxu0 %v184
      %v260 = vpop.f32.mrb[0].mxu0
      %v261 = vadd.f32 0.0, %v260
      %v262 = vpop.f32.mrb[0].mxu0
      %v263 = vpop.f32.mrb[0].mxu0
      %v264 = vadd.f32 0.0, %v263
      %v265 = vpop.f32.mrb[0].mxu0
      %266 = vmatprep.mubr.bf16.mxu0 0
      %267 = vmatmul.mubr.bf16.gmra.mrb[0].mxu0 %v187
      %v268 = vpop.f32.mrb[0].mxu0
      %v269 = vadd.f32 0.0, %v268
      %v270 = vpop.f32.mrb[0].mxu0
      %v271 = vpop.f32.mrb[0].mxu0
      %v272 = vadd.f32 0.0, %v271
      %v273 = vpop.f32.mrb[0].mxu0
      %274 = vmatprep.mubr.bf16.mxu0 0
      %275 = vmatmul.mubr.bf16.gmra.mrb[0].mxu0 %v190
      %v276 = vpop.f32.mrb[0].mxu0
      %v277 = vadd.f32 0.0, %v276
      %v278 = vpop.f32.mrb[0].mxu0
      %v279 = vpop.f32.mrb[0].mxu0
      %v280 = vadd.f32 0.0, %v279
      %v281 = vpop.f32.mrb[0].mxu0
      %282 = vmatprep.mubr.bf16.mxu0 0
      %283 = vmatmul.mubr.bf16.gmra.mrb[0].mxu0 %v193
      %v284 = vpop.f32.mrb[0].mxu0
      %v285 = vadd.f32 0.0, %v284
      %v286 = vpop.f32.mrb[0].mxu0
      %v287 = vpop.f32.mrb[0].mxu0
      %v288 = vadd.f32 0.0, %v287
      %v289 = vpop.f32.mrb[0].mxu0
      %290 = vmatprep.mubr.bf16.mxu0 0
      %291 = vmatmul.mubr.bf16.gmra.mrb[0].mxu0 %v196
      %v292 = vpop.f32.mrb[0].mxu0
      %v293 = vadd.f32 0.0, %v292
      %v294 = vpop.f32.mrb[0].mxu0
      %v295 = vpop.f32.mrb[0].mxu0
      %v296 = vadd.f32 0.0, %v295
      %v297 = vpop.f32.mrb[0].mxu0
      %298 = vdwg.mxu0
      %v299 = vmax.f32 %v237, 0.0
      %v300 = vmax.f32 %v240, 0.0
      %v301 = vmax.f32 %v245, 0.0
      %v302 = vmax.f32 %v248, 0.0
      %v303 = vmax.f32 %v253, 0.0
      %v304 = vmax.f32 %v256, 0.0
      %v305 = vmax.f32 %v261, 0.0
      %v306 = vmax.f32 %v264, 0.0
      %v307 = vmax.f32 %v269, 0.0
      %v308 = vmax.f32 %v272, 0.0
      %v309 = vmax.f32 %v277, 0.0
      %v310 = vmax.f32 %v280, 0.0
      %v311 = vmax.f32 %v285, 0.0
      %v312 = vmax.f32 %v288, 0.0
      %v313 = vmax.f32 %v293, 0.0
      %v314 = vmax.f32 %v296, 0.0
      %v315 = vpack.c.bf16 %v300, %v299
      %v316 = vpack.c.bf16 %v302, %v301
      %v317 = vpack.c.bf16 %v304, %v303
      %v318 = vpack.c.bf16 %v306, %v305
      %v319 = vpack.c.bf16 %v308, %v307
      %v320 = vpack.c.bf16 %v310, %v309
      %v321 = vpack.c.bf16 %v312, %v311
      %v322 = vpack.c.bf16 %v314, %v313
      %v331 = vunpack.c.l.b16 %v315
      %v332 = vunpack.c.h.b16 %v315
      %v333 = vunpack.c.l.b16 %v316
      %v334 = vunpack.c.h.b16 %v316
      %v335 = vunpack.c.l.b16 %v317
      %v336 = vunpack.c.h.b16 %v317
      %v337 = vunpack.c.l.b16 %v318
      %v338 = vunpack.c.h.b16 %v318
      %v339 = vunpack.c.l.b16 %v319
      %v340 = vunpack.c.h.b16 %v319
      %v341 = vunpack.c.l.b16 %v320
      %v342 = vunpack.c.h.b16 %v320
      %v343 = vunpack.c.l.b16 %v321
      %v344 = vunpack.c.h.b16 %v321
      %v345 = vunpack.c.l.b16 %v322
      %v346 = vunpack.c.h.b16 %v322
      %v347 = vpack.c.b16 %v331, %v331
      %v348 = vpack.c.b16 %v332, %v332
      %v349 = vpack.c.b16 %v333, %v333
      %v350 = vpack.c.b16 %v334, %v334
      %v351 = vpack.c.b16 %v335, %v335
      %v352 = vpack.c.b16 %v336, %v336
      %v353 = vpack.c.b16 %v337, %v337
      %v354 = vpack.c.b16 %v338, %v338
      %v355 = vpack.c.b16 %v339, %v339
      %v356 = vpack.c.b16 %v340, %v340
      %v357 = vpack.c.b16 %v341, %v341
      %v358 = vpack.c.b16 %v342, %v342
      %v359 = vpack.c.b16 %v343, %v343
      %v360 = vpack.c.b16 %v344, %v344
      %v361 = vpack.c.b16 %v345, %v345
      %v362 = vpack.c.b16 %v346, %v346
      %vm379 = vcmask 257024
      %380 = vst.msk [vmem:[%s145] sm:$0xf] %vm379, %v347
      %381 = vst.msk [vmem:[%s145 + $0x4] sm:$0xf] %vm379, %v348
      %382 = vst.msk [vmem:[%s145 + $0x8] sm:$0xf] %vm379, %v349
      %383 = vst.msk [vmem:[%s145 + $0xc] sm:$0xf] %vm379, %v350
      %384 = vst.msk [vmem:[%s145 + $0x10] sm:$0xf] %vm379, %v351
      %385 = vst.msk [vmem:[%s145 + $0x14] sm:$0xf] %vm379, %v352
      %386 = vst.msk [vmem:[%s145 + $0x18] sm:$0xf] %vm379, %v353
      %387 = vst.msk [vmem:[%s145 + $0x1c] sm:$0xf] %vm379, %v354
      %388 = vst.msk [vmem:[%s145 + $0x20] sm:$0xf] %vm379, %v355
      %389 = vst.msk [vmem:[%s145 + $0x24] sm:$0xf] %vm379, %v356
      %390 = vst.msk [vmem:[%s145 + $0x28] sm:$0xf] %vm379, %v357
      %391 = vst.msk [vmem:[%s145 + $0x2c] sm:$0xf] %vm379, %v358
      %392 = vst.msk [vmem:[%s145 + $0x30] sm:$0xf] %vm379, %v359
      %393 = vst.msk [vmem:[%s145 + $0x34] sm:$0xf] %vm379, %v360
      %394 = vst.msk [vmem:[%s145 + $0x38] sm:$0xf] %vm379, %v361
      %395 = vst.msk [vmem:[%s145 + $0x3c] sm:$0xf] %vm379, %v362
      %s396 = smul.u32 16, %s13
      %p397 = scmp.lt.s32.totalorder %s396, 63
      %s398 = scalar_select %p397, %s396, 63
      %s399 = smul.addr %s398, 4
      %s400 = scalar_lea.vmem %s2, %s399
      // Predicated region
      $region29: #{teacher_model_forward.3} parent=27 // pred_check
        %p401 = pneg %p78
      $region30: #{teacher_model_forward.3} parent=27 // pred_check_branch
        %403 = sbr.rel (%p401) target = $region32
      $region31: #{teacher_model_forward.3} parent=27 // pred_region
        %s404 = smul.u32 16, %s13
      $region32: #{teacher_model_forward.3} parent=27 // pred_fallthru
        _
    $region28: #{teacher_model_forward.3} parent=5 // pred_fallthru
      _
    %p405 = scmp.le.s32.totalorder 2, %s8
    // Predicated region
    $region33: #{teacher_model_forward.3} parent=5 // pred_check
      %p406 = pneg %p405
    $region34: #{teacher_model_forward.3} parent=5 // pred_check_branch
      %408 = sbr.rel (%p406) target = $region36
    $region35: #{teacher_model_forward.3} parent=5 // pred_region
      %s409 = ssub.s32 %s8, 2
      // Predicated region
      $region37: #{teacher_model_forward.3} parent=35 // pred_check
        %p410 = pneg %p84
      $region38: #{teacher_model_forward.3} parent=35 // pred_check_branch
        %412 = sbr.rel (%p410) target = $region40
      $region39: #{teacher_model_forward.3} parent=35 // pred_region
        %s413 = smul.u32 16, %s14
        %p414 = scmp.lt.s32.totalorder %s413, 63
        %s415 = scalar_select %p414, %s413, 63
        %s416 = smul.addr %s415, 4
        %s417 = scalar_lea.vmem %s2, %s416
      $region40: #{teacher_model_forward.3} parent=35 // pred_fallthru
        _
    $region36: #{teacher_model_forward.3} parent=5 // pred_fallthru
      _
  $region6: #{teacher_model_forward.3} parent=0 // loop_footer
    %s12 = sadd.s32 1, %s8
  $region7: #{teacher_model_forward.3} parent=0 // loop_footer_branch
    %7 = sbr.rel target = $region3
  $region8: #{teacher_model_forward.3} parent=0 // loop_exit
    _

// kernel: teacher_model_forward.5
$region0: #{teacher_model_forward.5}
  #allocation0 [shape = 'u32[]', space=smem, size = 0x4, offset = 0x4, fixed_abs, tag = 'smem constant byte address 0x4 - core index']
  #allocation1 [shape = 'u32[144,128]{1,0:T(1,128)}', space=vmem, size = 0x12000, scoped, tag = 'internal scratch']
  %s0 = inlined_call_operand.vmem [shape: f32[2,32], index: 0, kind: input, shape index: {}]
  %s1 = inlined_call_operand.vmem [shape: bf16[32,512], index: 1, kind: input, shape index: {}]
  %s2 = inlined_call_operand.vmem [shape: bf16[512,128], index: 2, kind: input, shape index: {}]
  %s3 = inlined_call_operand.hbm [shape: f32[2,128], index: 3, kind: output, shape index: {}]
  %s4 = sld [smem:[#allocation0]]
  $region22: #{teacher_model_forward.5} parent=0
    _
  %s6 = ssub.s32 1, %s4
  %s7 = scalar_select 0, %s6, %s4
  $region1: #{teacher_model_forward.5} parent=0
    #allocation2 [shape = 'u8[1024]{0}', space=vmem, size = 0x400, scoped, tag = 'output window, operand 0, single buffered']
    #allocation3 [shape = 's32[1]{0}', space=sflag, size = 0x4, scoped, tag = 'scoped memory for teacher_model_forward.5']
    %8 = vsyncpa [#allocation3], 0
    // Predicated region
    $region2: #{teacher_model_forward.5} parent=1 // pred_check
      _
    $region3: #{teacher_model_forward.5} parent=1 // pred_check_branch
      %10 = sbr.rel (0) target = $region5
    $region4: #{teacher_model_forward.5} parent=1 // pred_region
      _
    $region5: #{teacher_model_forward.5} parent=1 // pred_fallthru
      _
    // Predicated region
    $region6: #{teacher_model_forward.5} parent=1 // pred_check
      _
    $region7: #{teacher_model_forward.5} parent=1 // pred_check_branch
      %12 = sbr.rel (0) target = $region9
    $region8: #{teacher_model_forward.5} parent=1 // pred_region
      _
    $region9: #{teacher_model_forward.5} parent=1 // pred_fallthru
      _
    // Predicated region
    $region10: #{teacher_model_forward.5} parent=1 // pred_check
      _
    $region11: #{teacher_model_forward.5} parent=1 // pred_check_branch
      %14 = sbr.rel (0) target = $region13
    $region12: #{teacher_model_forward.5} parent=1 // pred_region
      _
    $region13: #{teacher_model_forward.5} parent=1 // pred_fallthru
      _
    %v16 = vld [vmem:[%s0] sm:$0x3]
    %v17 = vmax.f32 %v16, 0.0
    %v18 = vpack.c.bf16 %v17, %v17
    %v19 = vld [vmem:[%s1] sm:$0xff]
    %v20 = vld [vmem:[%s1 + $0x8] sm:$0xff]
    %v21 = vld [vmem:[%s1 + $0x10] sm:$0xff]
    %v22 = vld [vmem:[%s1 + $0x18] sm:$0xff]
    %v23 = vld [vmem:[%s1 + $0x20] sm:$0xff]
    %v24 = vld [vmem:[%s1 + $0x28] sm:$0xff]
    %v25 = vld [vmem:[%s1 + $0x30] sm:$0xff]
    %v26 = vld [vmem:[%s1 + $0x38] sm:$0xff]
    %v35 = vunpack.c.l.b16 %v19
    %v36 = vunpack.c.h.b16 %v19
    %v37 = vunpack.c.l.b16 %v20
    %v38 = vunpack.c.h.b16 %v20
    %v39 = vunpack.c.l.b16 %v21
    %v40 = vunpack.c.h.b16 %v21
    %v41 = vunpack.c.l.b16 %v22
    %v42 = vunpack.c.h.b16 %v22
    %v43 = vunpack.c.l.b16 %v23
    %v44 = vunpack.c.h.b16 %v23
    %v45 = vunpack.c.l.b16 %v24
    %v46 = vunpack.c.h.b16 %v24
    %v47 = vunpack.c.l.b16 %v25
    %v48 = vunpack.c.h.b16 %v25
    %v49 = vunpack.c.l.b16 %v26
    %v50 = vunpack.c.h.b16 %v26
    %v51 = vpack.c.b16 %v39, %v35
    %v52 = vpack.c.b16 %v40, %v36
    %v53 = vpack.c.b16 %v41, %v37
    %v54 = vpack.c.b16 %v42, %v38
    %v55 = vpack.c.b16 %v47, %v43
    %v56 = vpack.c.b16 %v48, %v44
    %v57 = vpack.c.b16 %v49, %v45
    %v58 = vpack.c.b16 %v50, %v46
    %vm67 = vcmask 261120
    %v69 = vsel %vm67, %v18, 0
    %71 = vmatprep.subr.bf16.mxu0 %v52
    %72 = vmatpush1.bf16.msra.mxu0 %v51
    %73 = vmatprep.subr.bf16.mxu0 %v56
    %74 = vmatpush1.bf16.msra.mxu0 %v55
    %75 = vmatprep.subr.bf16.mxu0 0
    %76 = vmatpush1.bf16.msra.mxu0 0
    %77 = vmatprep.subr.bf16.mxu0 0
    %78 = vmatpush1.bf16.msra.mxu0 0
    %79 = vmatprep.subr.bf16.mxu0 0
    %80 = vmatpush1.bf16.msra.mxu0 0
    %81 = vmatprep.subr.bf16.mxu0 0
    %82 = vmatpush1.bf16.msra.mxu0 0
    %83 = vmatprep.subr.bf16.mxu0 0
    %84 = vmatpush1.bf16.msra.mxu0 0
    %85 = vmatprep.subr.bf16.mxu0 0
    %86 = vmatpush1.bf16.msra.mxu0 0
    %87 = vmatprep.subr.bf16.mxu0 0
    %88 = vmatpush1.bf16.msra.mxu0 0
    %89 = vmatprep.subr.bf16.mxu0 0
    %90 = vmatpush1.bf16.msra.mxu0 0
    %91 = vmatprep.subr.bf16.mxu0 0
    %92 = vmatpush1.bf16.msra.mxu0 0
    %93 = vmatprep.subr.bf16.mxu0 0
    %94 = vmatpush1.bf16.msra.mxu0 0
    %95 = vmatprep.subr.bf16.mxu0 0
    %96 = vmatpush1.bf16.msra.mxu0 0
    %97 = vmatprep.subr.bf16.mxu0 0
    %98 = vmatpush1.bf16.msra.mxu0 0
    %99 = vmatprep.subr.bf16.mxu0 0
    %100 = vmatpush1.bf16.msra.mxu0 0
    %101 = vmatprep.subr.bf16.mxu0 0
    %102 = vmatpush1.bf16.msra.mxu0 0
    %103 = vmatprep.mubr.bf16.mxu0 0
    %104 = vmatmul.mubr.bf16.gmra.mrb[0].mxu0 %v69
    %v105 = vpop.f32.mrb[0].mxu0
    %v106 = vadd.f32 0.0, %v105
    %v107 = vpop.f32.mrb[0].mxu0
    %v108 = vadd.f32 0.0, %v107
    %v109 = vpop.f32.mrb[0].mxu0
    %v110 = vpop.f32.mrb[0].mxu0
    %111 = vdwg.mxu0
    %112 = vmatprep.subr.bf16.mxu0 %v54
    %113 = vmatpush1.bf16.msra.mxu0 %v53
    %114 = vmatprep.subr.bf16.mxu0 %v58
    %115 = vmatpush1.bf16.msra.mxu0 %v57
    %116 = vmatprep.subr.bf16.mxu0 0
    %117 = vmatpush1.bf16.msra.mxu0 0
    %118 = vmatprep.subr.bf16.mxu0 0
    %119 = vmatpush1.bf16.msra.mxu0 0
    %120 = vmatprep.subr.bf16.mxu0 0
    %121 = vmatpush1.bf16.msra.mxu0 0
    %122 = vmatprep.subr.bf16.mxu0 0
    %123 = vmatpush1.bf16.msra.mxu0 0
    %124 = vmatprep.subr.bf16.mxu0 0
    %125 = vmatpush1.bf16.msra.mxu0 0
    %126 = vmatprep.subr.bf16.mxu0 0
    %127 = vmatpush1.bf16.msra.mxu0 0
    %128 = vmatprep.subr.bf16.mxu0 0
    %129 = vmatpush1.bf16.msra.mxu0 0
    %130 = vmatprep.subr.bf16.mxu0 0
    %131 = vmatpush1.bf16.msra.mxu0 0
    %132 = vmatprep.subr.bf16.mxu0 0
    %133 = vmatpush1.bf16.msra.mxu0 0
    %134 = vmatprep.subr.bf16.mxu0 0
    %135 = vmatpush1.bf16.msra.mxu0 0
    %136 = vmatprep.subr.bf16.mxu0 0
    %137 = vmatpush1.bf16.msra.mxu0 0
    %138 = vmatprep.subr.bf16.mxu0 0
    %139 = vmatpush1.bf16.msra.mxu0 0
    %140 = vmatprep.subr.bf16.mxu0 0
    %141 = vmatpush1.bf16.msra.mxu0 0
    %142 = vmatprep.subr.bf16.mxu0 0
    %143 = vmatpush1.bf16.msra.mxu0 0
    %144 = vmatprep.mubr.bf16.mxu0 0
    %145 = vmatmul.mubr.bf16.gmra.mrb[0].mxu0 %v69
    %v146 = vpop.f32.mrb[0].mxu0
    %v147 = vadd.f32 0.0, %v146
    %v148 = vpop.f32.mrb[0].mxu0
    %v149 = vadd.f32 0.0, %v148
    %v150 = vpop.f32.mrb[0].mxu0
    %v151 = vpop.f32.mrb[0].mxu0
    %152 = vdwg.mxu0
    %v153 = vpack.c.bf16 %v106, %v106
    %v154 = vpack.c.bf16 %v108, %v108
    %v155 = vpack.c.bf16 %v147, %v147
    %v156 = vpack.c.bf16 %v149, %v149
    %v157 = vld [vmem:[%s2] sm:$0xf]
    %v158 = vld [vmem:[%s2 + $0x4] sm:$0xf]
    %v159 = vld [vmem:[%s2 + $0x8] sm:$0xf]
    %v160 = vld [vmem:[%s2 + $0xc] sm:$0xf]
    %v161 = vld [vmem:[%s2 + $0x10] sm:$0xf]
    %v162 = vld [vmem:[%s2 + $0x14] sm:$0xf]
    %v163 = vld [vmem:[%s2 + $0x18] sm:$0xf]
    %v164 = vld [vmem:[%s2 + $0x1c] sm:$0xf]
    %v165 = vld [vmem:[%s2 + $0x20] sm:$0xf]
    %v166 = vld [vmem:[%s2 + $0x24] sm:$0xf]
    %v167 = vld [vmem:[%s2 + $0x28] sm:$0xf]
    %v168 = vld [vmem:[%s2 + $0x2c] sm:$0xf]
    %v169 = vld [vmem:[%s2 + $0x30] sm:$0xf]
    %v170 = vld [vmem:[%s2 + $0x34] sm:$0xf]
    %v171 = vld [vmem:[%s2 + $0x38] sm:$0xf]
    %v172 = vld [vmem:[%s2 + $0x3c] sm:$0xf]
    %v173 = vld [vmem:[%s2 + $0x40] sm:$0xf]
    %v174 = vld [vmem:[%s2 + $0x44] sm:$0xf]
    %v175 = vld [vmem:[%s2 + $0x48] sm:$0xf]
    %v176 = vld [vmem:[%s2 + $0x4c] sm:$0xf]
    %v177 = vld [vmem:[%s2 + $0x50] sm:$0xf]
    %v178 = vld [vmem:[%s2 + $0x54] sm:$0xf]
    %v179 = vld [vmem:[%s2 + $0x58] sm:$0xf]
    %v180 = vld [vmem:[%s2 + $0x5c] sm:$0xf]
    %v181 = vld [vmem:[%s2 + $0x60] sm:$0xf]
    %v182 = vld [vmem:[%s2 + $0x64] sm:$0xf]
    %v183 = vld [vmem:[%s2 + $0x68] sm:$0xf]
    %v184 = vld [vmem:[%s2 + $0x6c] sm:$0xf]
    %v185 = vld [vmem:[%s2 + $0x70] sm:$0xf]
    %v186 = vld [vmem:[%s2 + $0x74] sm:$0xf]
    %v187 = vld [vmem:[%s2 + $0x78] sm:$0xf]
    %v188 = vld [vmem:[%s2 + $0x7c] sm:$0xf]
    %v189 = vld [vmem:[%s2 + $0x80] sm:$0xf]
    %v190 = vld [vmem:[%s2 + $0x84] sm:$0xf]
    %v191 = vld [vmem:[%s2 + $0x88] sm:$0xf]
    %v192 = vld [vmem:[%s2 + $0x8c] sm:$0xf]
    %v193 = vld [vmem:[%s2 + $0x90] sm:$0xf]
    %v194 = vld [vmem:[%s2 + $0x94] sm:$0xf]
    %v195 = vld [vmem:[%s2 + $0x98] sm:$0xf]
    %v196 = vld [vmem:[%s2 + $0x9c] sm:$0xf]
    %v197 = vld [vmem:[%s2 + $0xa0] sm:$0xf]
    %v198 = vld [vmem:[%s2 + $0xa4] sm:$0xf]
    %v199 = vld [vmem:[%s2 + $0xa8] sm:$0xf]
    %v200 = vld [vmem:[%s2 + $0xac] sm:$0xf]
    %v201 = vld [vmem:[%s2 + $0xb0] sm:$0xf]
    %v202 = vld [vmem:[%s2 + $0xb4] sm:$0xf]
    %v203 = vld [vmem:[%s2 + $0xb8] sm:$0xf]
    %v204 = vld [vmem:[%s2 + $0xbc] sm:$0xf]
    %v205 = vld [vmem:[%s2 + $0xc0] sm:$0xf]
    %v206 = vld [vmem:[%s2 + $0xc4] sm:$0xf]
    %v207 = vld [vmem:[%s2 + $0xc8] sm:$0xf]
    %v208 = vld [vmem:[%s2 + $0xcc] sm:$0xf]
    %v209 = vld [vmem:[%s2 + $0xd0] sm:$0xf]
    %v210 = vld [vmem:[%s2 + $0xd4] sm:$0xf]
    %v211 = vld [vmem:[%s2 + $0xd8] sm:$0xf]
    %v212 = vld [vmem:[%s2 + $0xdc] sm:$0xf]
    %v213 = vld [vmem:[%s2 + $0xe0] sm:$0xf]
    %v214 = vld [vmem:[%s2 + $0xe4] sm:$0xf]
    %v215 = vld [vmem:[%s2 + $0xe8] sm:$0xf]
    %v216 = vld [vmem:[%s2 + $0xec] sm:$0xf]
    %v217 = vld [vmem:[%s2 + $0xf0] sm:$0xf]
    %v218 = vld [vmem:[%s2 + $0xf4] sm:$0xf]
    %v219 = vld [vmem:[%s2 + $0xf8] sm:$0xf]
    %v220 = vld [vmem:[%s2 + $0xfc] sm:$0xf]
    %v285 = vunpack.c.l.b16 %v157
    %v286 = vunpack.c.l.b16 %v158
    %v287 = vunpack.c.l.b16 %v159
    %v288 = vunpack.c.l.b16 %v160
    %v289 = vunpack.c.l.b16 %v161
    %v290 = vunpack.c.l.b16 %v162
    %v291 = vunpack.c.l.b16 %v163
    %v292 = vunpack.c.l.b16 %v164
    %v293 = vunpack.c.l.b16 %v165
    %v294 = vunpack.c.l.b16 %v166
    %v295 = vunpack.c.l.b16 %v167
    %v296 = vunpack.c.l.b16 %v168
    %v297 = vunpack.c.l.b16 %v169
    %v298 = vunpack.c.l.b16 %v170
    %v299 = vunpack.c.l.b16 %v171
    %v300 = vunpack.c.l.b16 %v172
    %v301 = vunpack.c.l.b16 %v173
    %v302 = vunpack.c.l.b16 %v174
    %v303 = vunpack.c.l.b16 %v175
    %v304 = vunpack.c.l.b16 %v176
    %v305 = vunpack.c.l.b16 %v177
    %v306 = vunpack.c.l.b16 %v178
    %v307 = vunpack.c.l.b16 %v179
    %v308 = vunpack.c.l.b16 %v180
    %v309 = vunpack.c.l.b16 %v181
    %v310 = vunpack.c.l.b16 %v182
    %v311 = vunpack.c.l.b16 %v183
    %v312 = vunpack.c.l.b16 %v184
    %v313 = vunpack.c.l.b16 %v185
    %v314 = vunpack.c.l.b16 %v186
    %v315 = vunpack.c.l.b16 %v187
    %v316 = vunpack.c.l.b16 %v188
    %v317 = vunpack.c.l.b16 %v189
    %v318 = vunpack.c.l.b16 %v190
    %v319 = vunpack.c.l.b16 %v191
    %v320 = vunpack.c.l.b16 %v192
    %v321 = vunpack.c.l.b16 %v193
    %v322 = vunpack.c.l.b16 %v194
    %v323 = vunpack.c.l.b16 %v195
    %v324 = vunpack.c.l.b16 %v196
    %v325 = vunpack.c.l.b16 %v197
    %v326 = vunpack.c.l.b16 %v198
    %v327 = vunpack.c.l.b16 %v199
    %v328 = vunpack.c.l.b16 %v200
    %v329 = vunpack.c.l.b16 %v201
    %v330 = vunpack.c.l.b16 %v202
    %v331 = vunpack.c.l.b16 %v203
    %v332 = vunpack.c.l.b16 %v204
    %v333 = vunpack.c.l.b16 %v205
    %v334 = vunpack.c.l.b16 %v206
    %v335 = vunpack.c.l.b16 %v207
    %v336 = vunpack.c.l.b16 %v208
    %v337 = vunpack.c.l.b16 %v209
    %v338 = vunpack.c.l.b16 %v210
    %v339 = vunpack.c.l.b16 %v211
    %v340 = vunpack.c.l.b16 %v212
    %v341 = vunpack.c.l.b16 %v213
    %v342 = vunpack.c.l.b16 %v214
    %v343 = vunpack.c.l.b16 %v215
    %v344 = vunpack.c.l.b16 %v216
    %v345 = vunpack.c.l.b16 %v217
    %v346 = vunpack.c.l.b16 %v218
    %v347 = vunpack.c.l.b16 %v219
    %v348 = vunpack.c.l.b16 %v220
    %v349 = vpack.c.b16 %v286, %v285
    %v350 = vpack.c.b16 %v288, %v287
    %v351 = vpack.c.b16 %v290, %v289
    %v352 = vpack.c.b16 %v292, %v291
    %v353 = vpack.c.b16 %v294, %v293
    %v354 = vpack.c.b16 %v296, %v295
    %v355 = vpack.c.b16 %v298, %v297
    %v356 = vpack.c.b16 %v300, %v299
    %v357 = vpack.c.b16 %v302, %v301
    %v358 = vpack.c.b16 %v304, %v303
    %v359 = vpack.c.b16 %v306, %v305
    %v360 = vpack.c.b16 %v308, %v307
    %v361 = vpack.c.b16 %v310, %v309
    %v362 = vpack.c.b16 %v312, %v311
    %v363 = vpack.c.b16 %v314, %v313
    %v364 = vpack.c.b16 %v316, %v315
    %v365 = vpack.c.b16 %v318, %v317
    %v366 = vpack.c.b16 %v320, %v319
    %v367 = vpack.c.b16 %v322, %v321
    %v368 = vpack.c.b16 %v324, %v323
    %v369 = vpack.c.b16 %v326, %v325
    %v370 = vpack.c.b16 %v328, %v327
    %v371 = vpack.c.b16 %v330, %v329
    %v372 = vpack.c.b16 %v332, %v331
    %v373 = vpack.c.b16 %v334, %v333
    %v374 = vpack.c.b16 %v336, %v335
    %v375 = vpack.c.b16 %v338, %v337
    %v376 = vpack.c.b16 %v340, %v339
    %v377 = vpack.c.b16 %v342, %v341
    %v378 = vpack.c.b16 %v344, %v343
    %v379 = vpack.c.b16 %v346, %v345
    %v380 = vpack.c.b16 %v348, %v347
    %413 = vmatprep.subr.bf16.mxu0 0
    %414 = vmatpush1.bf16.msra.mxu0 %v349
    %415 = vmatprep.subr.bf16.mxu0 0
    %416 = vmatpush1.bf16.msra.mxu0 %v350
    %417 = vmatprep.subr.bf16.mxu0 0
    %418 = vmatpush1.bf16.msra.mxu0 %v351
    %419 = vmatprep.subr.bf16.mxu0 0
    %420 = vmatpush1.bf16.msra.mxu0 %v352
    %421 = vmatprep.subr.bf16.mxu0 0
    %422 = vmatpush1.bf16.msra.mxu0 %v353
    %423 = vmatprep.subr.bf16.mxu0 0
    %424 = vmatpush1.bf16.msra.mxu0 %v354
    %425 = vmatprep.subr.bf16.mxu0 0
    %426 = vmatpush1.bf16.msra.mxu0 %v355
    %427 = vmatprep.subr.bf16.mxu0 0
    %428 = vmatpush1.bf16.msra.mxu0 %v356
    %429 = vmatprep.subr.bf16.mxu0 0
    %430 = vmatpush1.bf16.msra.mxu0 %v357
    %431 = vmatprep.subr.bf16.mxu0 0
    %432 = vmatpush1.bf16.msra.mxu0 %v358
    %433 = vmatprep.subr.bf16.mxu0 0
    %434 = vmatpush1.bf16.msra.mxu0 %v359
    %435 = vmatprep.subr.bf16.mxu0 0
    %436 = vmatpush1.bf16.msra.mxu0 %v360
    %437 = vmatprep.subr.bf16.mxu0 0
    %438 = vmatpush1.bf16.msra.mxu0 %v361
    %439 = vmatprep.subr.bf16.mxu0 0
    %440 = vmatpush1.bf16.msra.mxu0 %v362
    %441 = vmatprep.subr.bf16.mxu0 0
    %442 = vmatpush1.bf16.msra.mxu0 %v363
    %443 = vmatprep.subr.bf16.mxu0 0
    %444 = vmatpush1.bf16.msra.mxu0 %v364
    %445 = vmatprep.mubr.bf16.mxu0 %v154
    %446 = vmatmul.mubr.bf16.gmra.mrb[0].mxu0 %v153
    %v447 = vpop.f32.mrb[0].mxu0
    %v448 = vadd.f32 0.0, %v447
    %v449 = vpop.f32.mrb[0].mxu0
    %v450 = vpop.f32.mrb[0].mxu0
    %v451 = vpop.f32.mrb[0].mxu0
    %452 = vdwg.mxu0
    %453 = vmatprep.subr.bf16.mxu0 0
    %454 = vmatpush1.bf16.msra.mxu0 %v365
    %455 = vmatprep.subr.bf16.mxu0 0
    %456 = vmatpush1.bf16.msra.mxu0 %v366
    %457 = vmatprep.subr.bf16.mxu0 0
    %458 = vmatpush1.bf16.msra.mxu0 %v367
    %459 = vmatprep.subr.bf16.mxu0 0
    %460 = vmatpush1.bf16.msra.mxu0 %v368
    %461 = vmatprep.subr.bf16.mxu0 0
    %462 = vmatpush1.bf16.msra.mxu0 %v369
    %463 = vmatprep.subr.bf16.mxu0 0
    %464 = vmatpush1.bf16.msra.mxu0 %v370
    %465 = vmatprep.subr.bf16.mxu0 0
    %466 = vmatpush1.bf16.msra.mxu0 %v371
    %467 = vmatprep.subr.bf16.mxu0 0
    %468 = vmatpush1.bf16.msra.mxu0 %v372
    %469 = vmatprep.subr.bf16.mxu0 0
    %470 = vmatpush1.bf16.msra.mxu0 %v373
    %471 = vmatprep.subr.bf16.mxu0 0
    %472 = vmatpush1.bf16.msra.mxu0 %v374
    %473 = vmatprep.subr.bf16.mxu0 0
    %474 = vmatpush1.bf16.msra.mxu0 %v375
    %475 = vmatprep.subr.bf16.mxu0 0
    %476 = vmatpush1.bf16.msra.mxu0 %v376
    %477 = vmatprep.subr.bf16.mxu0 0
    %478 = vmatpush1.bf16.msra.mxu0 %v377
    %479 = vmatprep.subr.bf16.mxu0 0
    %480 = vmatpush1.bf16.msra.mxu0 %v378
    %481 = vmatprep.subr.bf16.mxu0 0
    %482 = vmatpush1.bf16.msra.mxu0 %v379
    %483 = vmatprep.subr.bf16.mxu0 0
    %484 = vmatpush1.bf16.msra.mxu0 %v380
    %485 = vmatprep.mubr.bf16.mxu0 %v156
    %486 = vmatmul.mubr.bf16.gmra.mrb[0].mxu0 %v155
    %v487 = vpop.f32.mrb[0].mxu0
    %v488 = vadd.f32 %v448, %v487
    %v489 = vpop.f32.mrb[0].mxu0
    %v490 = vpop.f32.mrb[0].mxu0
    %v491 = vpop.f32.mrb[0].mxu0
    %492 = vdwg.mxu0
    %493 = vst [vmem:[#allocation2] sm:$0x3] %v488
    // Predicated region
    $region14: #{teacher_model_forward.5} parent=1 // pred_check
      _
    $region15: #{teacher_model_forward.5} parent=1 // pred_check_branch
      %495 = sbr.rel (0) target = $region17
    $region16: #{teacher_model_forward.5} parent=1 // pred_region
      %s497 = ssub.s32 32, 32
      %498 = vsyncadd [#allocation3], %s497
      %s500 = sshll.u32 [#allocation2], 4
      %s501 = int_to_ptr.vmem [resolvable:$true] %s500
      %503 = dma.vmem_to_hbm [thread:$0]  %s501, 32, %s3, [#allocation3]
    $region17: #{teacher_model_forward.5} parent=1 // pred_fallthru
      _
    // Predicated region
    $region18: #{teacher_model_forward.5} parent=1 // pred_check
      _
    $region19: #{teacher_model_forward.5} parent=1 // pred_check_branch
      %505 = sbr.rel (0) target = $region21
    $region20: #{teacher_model_forward.5} parent=1 // pred_region
      %506 = dma.done [#allocation3], 32
    $region21: #{teacher_model_forward.5} parent=1 // pred_fallthru
      _
    %507 = vsyncpa [#allocation3], 1

</llo_original>
